<compile_context>
chip_gen: v5e
topology: v5e:2x2
jax: 0.10.0
libtpu: 0.0.40
codegen_flags: <defaults>
</compile_context>

<pallas_src>
import jax
import jax.numpy as jnp
from jax.experimental import pallas as pl
from jax.experimental.pallas import tpu as pltpu


def _sublane(itemsize: int) -> int:
    if itemsize == 1:
        return 32
    if itemsize == 2:
        return 16
    return 8


def _make_kernel(margin: float, batch: int, block_rows: int):
    """margin/batch/block_rows are Python scalars -> literals, not captured arrays."""

    def kernel(a_ref, p_ref, n_ref, o_ref):
        a = a_ref[...].astype(jnp.float32)
        p = p_ref[...].astype(jnp.float32)
        n = n_ref[...].astype(jnp.float32)

        dp = a - p
        dn = a - n
        # Single fused cross-lane reduction: sum(dp^2) - sum(dn^2) per row.
        diff = jnp.sum(dp * dp - dn * dn, axis=-1, keepdims=True)      # (tb, 1)
        hinge = jnp.maximum(diff + margin, 0.0)

        # Mask rows past the real batch (last tile may overhang) to exact 0 so
        # the wrapper can just sum / B.  jnp.where also squashes any NaN that
        # garbage out-of-bounds input rows could have produced.
        row = (pl.program_id(0) * block_rows
               + jax.lax.broadcasted_iota(jnp.int32, (block_rows, 1), 0))
        o_ref[...] = jnp.where(row < batch, hinge, 0.0)

    return kernel


def _pick_block_rows(batch: int, dim: int, itemsize: int) -> int:
    """Size the batch tile by VMEM bytes; keep >=2 tiles for v7x megacore."""
    sub = _sublane(itemsize)
    # ~4 MiB per input block -> 3 inputs x 2 pipeline buffers ~ 24 MiB VMEM,
    # comfortably under every generation's limit while keeping per-step DMA
    # time >> the ~0.35 us grid-step overhead.
    target_block_bytes = 4 * 1024 * 1024
    tb = (target_block_bytes // max(1, dim * itemsize)) // sub * sub
    tb = max(sub, tb)
    # Guarantee at least 2 grid steps when the batch allows it, so the
    # "parallel" axis can shard across both v7x TensorCores.
    half = -(-batch // 2)                       # ceil(batch / 2)
    half = -(-half // sub) * sub                # round up to sublane multiple
    tb = min(tb, max(sub, half))
    return tb


def triple_contrastive_loss(anchor, positive, negative,
                            margin: float = 1.0, block_rows: int | None = None):
    """Pallas TPU implementation of TripleContrastiveLoss.forward."""
    assert anchor.shape == positive.shape == negative.shape
    assert anchor.ndim == 2, "expected (batch, embedding_dim) inputs"
    B, D = anchor.shape
    itemsize = jnp.dtype(anchor.dtype).itemsize
    sub = _sublane(itemsize)

    if block_rows is None:
        tb = _pick_block_rows(B, D, itemsize)
    else:
        # Round user tile up to the dtype sublane multiple (bf16 needs 16).
        tb = max(sub, ((int(block_rows) + sub - 1) // sub) * sub)

    num_tiles = pl.cdiv(B, tb)
    out_rows = num_tiles * tb

    in_spec = pl.BlockSpec((tb, D), lambda i: (i, 0))

    # 3 inputs x 2 pipeline buffers + double-buffered (tb,1) f32 output.
    needed_vmem = 6 * tb * D * itemsize + 2 * tb * 4
    vmem_limit = int(max(needed_vmem + (2 << 20), 32 << 20))

    cost = pl.CostEstimate(
        flops=5 * B * D,                                  # 2 subs, 2 muls, 1 add/elem
        bytes_accessed=3 * B * D * itemsize + out_rows * 4,
        transcendentals=0,
    )

    per_row = pl.pallas_call(
        _make_kernel(float(margin), int(B), int(tb)),
        out_shape=jax.ShapeDtypeStruct((out_rows, 1), jnp.float32),
        grid=(num_tiles,),
        in_specs=[in_spec, in_spec, in_spec],
        out_specs=pl.BlockSpec((tb, 1), lambda i: (i, 0)),
        compiler_params=pltpu.CompilerParams(
            dimension_semantics=("parallel",),
            vmem_limit_bytes=vmem_limit),
        cost_estimate=cost,
    )(anchor, positive, negative)

    # Tail rows are exact zeros, so a plain sum over the slab is the mean.
    return jnp.sum(per_row) / B


def _reference(anchor, positive, negative, margin=1.0):
    a = anchor.astype(jnp.float32)
    p = positive.astype(jnp.float32)
    n = negative.astype(jnp.float32)
    dist_pos = jnp.sum((a - p) ** 2, axis=-1)
    dist_neg = jnp.sum((a - n) ** 2, axis=-1)
    return jnp.mean(jnp.maximum(dist_pos - dist_neg + margin, 0.0))


if __name__ == "__main__":
    key = jax.random.PRNGKey(0)

    # Case 1: f32, batch NOT a multiple of the tile -> exercises the in-kernel
    # tail mask and the multi-tile ("parallel") path (tb=8 -> 2 tiles).
    B1, D1 = 13, 128
    ka, kp, kn = jax.random.split(key, 3)
    a1 = jax.random.normal(ka, (B1, D1), dtype=jnp.float32)
    p1 = jax.random.normal(kp, (B1, D1), dtype=jnp.float32)
    n1 = jax.random.normal(kn, (B1, D1), dtype=jnp.float32)

    fn1 = jax.jit(lambda a, p, n: triple_contrastive_loss(a, p, n, margin=1.0))
    loss1 = jax.block_until_ready(fn1(a1, p1, n1))
    ref1 = _reference(a1, p1, n1, margin=1.0)
    assert jnp.allclose(loss1, ref1, rtol=1e-5, atol=1e-4), (loss1, ref1)

    # Case 2: bf16 inputs with a user tile of 8 (rounded up to 16 internally).
    B2, D2 = 32, 256
    kb = jax.random.split(key, 6)
    a2 = jax.random.normal(kb[3], (B2, D2), dtype=jnp.bfloat16)
    p2 = jax.random.normal(kb[4], (B2, D2), dtype=jnp.bfloat16)
    n2 = jax.random.normal(kb[5], (B2, D2), dtype=jnp.bfloat16)

    fn2 = jax.jit(lambda a, p, n: triple_contrastive_loss(a, p, n,
                                                          margin=1.0,
                                                          block_rows=8))
    loss2 = jax.block_until_ready(fn2(a2, p2, n2))
    ref2 = _reference(a2, p2, n2, margin=1.0)
    assert jnp.allclose(loss2, ref2, rtol=1e-5, atol=1e-4), (loss2, ref2)

    print("KERNEL_OK")
</pallas_src>

<mosaic_0001>
module attributes {stable_mosaic.version = 11 : i64} {
  func.func @kernel(%arg0: i32, %arg1: memref<8x128xf32, #tpu.memory_space<vmem>>, %arg2: memref<8x128xf32, #tpu.memory_space<vmem>>, %arg3: memref<8x128xf32, #tpu.memory_space<vmem>>, %arg4: memref<8x1xf32, #tpu.memory_space<vmem>>) attributes {dimension_semantics = [#tpu.dimension_semantics<parallel>], iteration_bounds = array<i64: 2>, scalar_prefetch = 0 : i64, scratch_operands = 0 : i64, tpu.core_type = #tpu.core_type<tc>, window_params = [{transform_indices = @transform_0, window_bounds = array<i64: 8, 128>}, {transform_indices = @transform_1, window_bounds = array<i64: 8, 128>}, {transform_indices = @transform_2, window_bounds = array<i64: 8, 128>}, {transform_indices = @transform_3, window_bounds = array<i64: 8, 1>}]} {
    %c0 = arith.constant 0 : index
    %c0_0 = arith.constant 0 : index
    %0 = vector.load %arg1[%c0, %c0_0] : memref<8x128xf32, #tpu.memory_space<vmem>>, vector<8x128xf32>
    %c0_1 = arith.constant 0 : index
    %c0_2 = arith.constant 0 : index
    %1 = vector.load %arg2[%c0_1, %c0_2] : memref<8x128xf32, #tpu.memory_space<vmem>>, vector<8x128xf32>
    %c0_3 = arith.constant 0 : index
    %c0_4 = arith.constant 0 : index
    %2 = vector.load %arg3[%c0_3, %c0_4] : memref<8x128xf32, #tpu.memory_space<vmem>>, vector<8x128xf32>
    %3 = arith.subf %0, %1 : vector<8x128xf32>
    %4 = arith.subf %0, %2 : vector<8x128xf32>
    %5 = arith.mulf %3, %3 : vector<8x128xf32>
    %6 = arith.mulf %4, %4 : vector<8x128xf32>
    %7 = arith.subf %5, %6 : vector<8x128xf32>
    %cst = arith.constant dense<0.000000e+00> : vector<8xf32>
    %8 = vector.multi_reduction <add>, %7, %cst [1] : vector<8x128xf32> to vector<8xf32>
    %9 = vector.shape_cast %8 : vector<8xf32> to vector<8x1xf32>
    %cst_5 = arith.constant 1.000000e+00 : f32
    %10 = vector.broadcast %cst_5 : f32 to vector<8x1xf32>
    %11 = arith.addf %9, %10 : vector<8x1xf32>
    %cst_6 = arith.constant 0.000000e+00 : f32
    %12 = vector.broadcast %cst_6 : f32 to vector<8x1xf32>
    %13 = arith.maximumf %11, %12 : vector<8x1xf32>
    %c8_i32 = arith.constant 8 : i32
    %14 = arith.muli %arg0, %c8_i32 : i32
    %15 = tpu.iota {dimensions = array<i32: 0>} : vector<8x1xi32>
    %16 = vector.broadcast %14 : i32 to vector<8x1xi32>
    %17 = arith.addi %16, %15 : vector<8x1xi32>
    %c13_i32 = arith.constant 13 : i32
    %18 = vector.broadcast %c13_i32 : i32 to vector<8x1xi32>
    %19 = arith.cmpi slt, %17, %18 : vector<8x1xi32>
    %cst_7 = arith.constant 0.000000e+00 : f32
    %20 = vector.broadcast %cst_7 : f32 to vector<8x1xf32>
    %21 = arith.select %19, %13, %20 : vector<8x1xi1>, vector<8x1xf32>
    %c0_8 = arith.constant 0 : index
    %c0_9 = arith.constant 0 : index
    %22 = vector.load %arg4[%c0_8, %c0_9] : memref<8x1xf32, #tpu.memory_space<vmem>>, vector<8x1xf32>
    tpu.vector_store %arg4[%c0_8, %c0_9], %21 {strides = array<i32>} : memref<8x1xf32, #tpu.memory_space<vmem>>, vector<8x1xf32>,
    return
  }
  func.func @transform_0(%arg0: i32) -> (i32, i32) {
    %c0_i32 = arith.constant 0 : i32
    %c0_i32_0 = arith.constant 0 : i32
    return %arg0, %c0_i32 : i32, i32
  }
  func.func @transform_1(%arg0: i32) -> (i32, i32) {
    %c0_i32 = arith.constant 0 : i32
    %c0_i32_0 = arith.constant 0 : i32
    return %arg0, %c0_i32 : i32, i32
  }
  func.func @transform_2(%arg0: i32) -> (i32, i32) {
    %c0_i32 = arith.constant 0 : i32
    %c0_i32_0 = arith.constant 0 : i32
    return %arg0, %c0_i32 : i32, i32
  }
  func.func @transform_3(%arg0: i32) -> (i32, i32) {
    %c0_i32 = arith.constant 0 : i32
    %c0_i32_0 = arith.constant 0 : i32
    return %arg0, %c0_i32 : i32, i32
  }
}

</mosaic_0001>

<llo_original>
// kernel: _lambda_.1
$region0: #{_lambda_.1}
  #allocation0 [shape = 'u32[]', space=smem, size = 0x4, offset = 0x4, fixed_abs, tag = 'smem constant byte address 0x4 - core index']
  #allocation1 [shape = 'u32[72,128]{1,0:T(1,128)}', space=vmem, size = 0x9000, scoped, tag = 'internal scratch']
  %s0 = inlined_call_operand.hbm [shape: f32[13,128], index: 0, kind: input, shape index: {}]
  %s1 = inlined_call_operand.hbm [shape: f32[13,128], index: 1, kind: input, shape index: {}]
  %s2 = inlined_call_operand.hbm [shape: f32[13,128], index: 2, kind: input, shape index: {}]
  %s3 = inlined_call_operand.vmem [shape: f32[16,1], index: 3, kind: output, shape index: {}]
  %s4 = sld [smem:[#allocation0]]
  $region57: #{_lambda_.1} parent=0
    _
  %s6 = ssub.s32 1, %s4
  %s7 = scalar_select 0, %s6, %s4
  $region1: #{_lambda_.1} parent=0
    #allocation2 [shape = 'u8[8192]{0}', space=vmem, size = 0x2000, scoped, tag = 'input window, operand 0']
    #allocation3 [shape = 's32[2]{0}', space=sflag, size = 0x8, scoped, tag = 'scoped memory for _lambda_.1']
    #allocation4 [shape = 'u8[8192]{0}', space=vmem, size = 0x2000, scoped, tag = 'input window, operand 1']
    #allocation5 [shape = 's32[2]{0}', space=sflag, size = 0x8, scoped, tag = 'scoped memory for _lambda_.1']
    #allocation6 [shape = 'u8[8192]{0}', space=vmem, size = 0x2000, scoped, tag = 'input window, operand 2']
    %8 = vsyncpa [#allocation3], 0
    %s9 = scalar_lea.sflag [#allocation3], 1
    %10 = vsyncpa %s9, 0
    %11 = vsyncpa [#allocation5], 0
    %s12 = scalar_lea.sflag [#allocation5], 1
    %13 = vsyncpa %s12, 0
    loop: start=0, step=1, limit=4
    $region2: #{_lambda_.1} parent=1 // loop_pre_header
      _
    $region3: #{_lambda_.1} parent=1 // loop_header
      %s15 = sphi 0, %s19
      %p16 = scmp.ge.s32.totalorder %s15, 4
      %s25 = sphi 0, %s27
      %s28 = sphi 0, %s25
      %s29 = sphi 0, %s28
      %s45 = sphi 0, %s29
      %s51 = sphi 0, %s53
      %s54 = sphi 0, %s51
      %s55 = sphi 0, %s54
      %s71 = sphi 0, %s55
      %s77 = sphi 0, %s79
      %s80 = sphi 0, %s77
      %s81 = sphi 0, %s80
      %s97 = sphi 0, %s81
      %s103 = sphi 0, %s105
      %s106 = sphi 0, %s103
      %s107 = sphi 0, %s106
      %s123 = sphi 0, %s107
    $region4: #{_lambda_.1} parent=1 // loop_header_branch
      %18 = sbr.rel (%p16) target = $region8
    $region5: #{_lambda_.1} parent=1 // loop_body
      %s20 = ssub.s32 %s15, 1
      %s21 = ssub.s32 %s15, 2
      %s22 = sadd.s32 %s15, 1
      %s23 = ssub.s32 %s15, %s22
      %p24 = scmp.eq.s32.totalorder %s23, 0
      %s26 = sadd.s32 %s25, 1
      %s27 = scalar_select %p24, %s25, %s26
      %p30 = pneg %p24
      %p31 = scmp.eq.s32.totalorder %s15, 1
      %p32 = por %p30, %p31
      %p33 = scmp.ne.s32.totalorder %s25, %s28
      %p34 = scmp.eq.s32.totalorder %s15, 0
      %p35 = por %p33, %p34
      %p36 = scmp.ne.s32.totalorder %s25, %s28
      %p37 = scmp.eq.s32.totalorder %s20, 1
      %p38 = por %p36, %p37
      %p39 = scmp.ne.s32.totalorder %s28, %s29
      %p40 = scmp.eq.s32.totalorder %s20, 0
      %p41 = por %p39, %p40
      %p42 = scmp.ne.s32.totalorder %s28, %s29
      %p43 = scmp.eq.s32.totalorder %s21, 1
      %p44 = por %p42, %p43
      %p46 = scmp.ne.s32.totalorder %s29, %s45
      %p47 = scmp.eq.s32.totalorder %s21, 0
      %p48 = por %p46, %p47
      %s49 = ssub.s32 %s15, %s22
      %p50 = scmp.eq.s32.totalorder %s49, 0
      %s52 = sadd.s32 %s51, 1
      %s53 = scalar_select %p50, %s51, %s52
      %p56 = pneg %p50
      %p57 = scmp.eq.s32.totalorder %s15, 1
      %p58 = por %p56, %p57
      %p59 = scmp.ne.s32.totalorder %s51, %s54
      %p60 = scmp.eq.s32.totalorder %s15, 0
      %p61 = por %p59, %p60
      %p62 = scmp.ne.s32.totalorder %s51, %s54
      %p63 = scmp.eq.s32.totalorder %s20, 1
      %p64 = por %p62, %p63
      %p65 = scmp.ne.s32.totalorder %s54, %s55
      %p66 = scmp.eq.s32.totalorder %s20, 0
      %p67 = por %p65, %p66
      %p68 = scmp.ne.s32.totalorder %s54, %s55
      %p69 = scmp.eq.s32.totalorder %s21, 1
      %p70 = por %p68, %p69
      %p72 = scmp.ne.s32.totalorder %s55, %s71
      %p73 = scmp.eq.s32.totalorder %s21, 0
      %p74 = por %p72, %p73
      %s75 = ssub.s32 %s15, %s22
      %p76 = scmp.eq.s32.totalorder %s75, 0
      %s78 = sadd.s32 %s77, 1
      %s79 = scalar_select %p76, %s77, %s78
      %p82 = pneg %p76
      %p83 = scmp.eq.s32.totalorder %s15, 1
      %p84 = por %p82, %p83
      %p85 = scmp.ne.s32.totalorder %s77, %s80
      %p86 = scmp.eq.s32.totalorder %s15, 0
      %p87 = por %p85, %p86
      %p88 = scmp.ne.s32.totalorder %s77, %s80
      %p89 = scmp.eq.s32.totalorder %s20, 1
      %p90 = por %p88, %p89
      %p91 = scmp.ne.s32.totalorder %s80, %s81
      %p92 = scmp.eq.s32.totalorder %s20, 0
      %p93 = por %p91, %p92
      %p94 = scmp.ne.s32.totalorder %s80, %s81
      %p95 = scmp.eq.s32.totalorder %s21, 1
      %p96 = por %p94, %p95
      %p98 = scmp.ne.s32.totalorder %s81, %s97
      %p99 = scmp.eq.s32.totalorder %s21, 0
      %p100 = por %p98, %p99
      %s101 = ssub.s32 %s15, %s22
      %p102 = scmp.eq.s32.totalorder %s101, 0
      %s104 = sadd.s32 %s103, 1
      %s105 = scalar_select %p102, %s103, %s104
      %p108 = pneg %p102
      %p109 = scmp.eq.s32.totalorder %s15, 1
      %p110 = por %p108, %p109
      %p111 = scmp.ne.s32.totalorder %s103, %s106
      %p112 = scmp.eq.s32.totalorder %s15, 0
      %p113 = por %p111, %p112
      %p114 = scmp.ne.s32.totalorder %s103, %s106
      %p115 = scmp.eq.s32.totalorder %s20, 1
      %p116 = por %p114, %p115
      %p117 = scmp.ne.s32.totalorder %s106, %s107
      %p118 = scmp.eq.s32.totalorder %s20, 0
      %p119 = por %p117, %p118
      %p120 = scmp.ne.s32.totalorder %s106, %s107
      %p121 = scmp.eq.s32.totalorder %s21, 1
      %p122 = por %p120, %p121
      %p124 = scmp.ne.s32.totalorder %s107, %s123
      %p125 = scmp.eq.s32.totalorder %s21, 0
      %p126 = por %p124, %p125
      %p127 = scmp.le.s32.totalorder 1, %s15
      %p128 = scmp.lt.s32.totalorder %s15, 3
      %p129 = pnand %p127, %p128
      %p130 = pneg %p129
      // Predicated region
      $region9: #{_lambda_.1} parent=5 // pred_check
        _
      $region10: #{_lambda_.1} parent=5 // pred_check_branch
        %132 = sbr.rel (%p129) target = $region12
      $region11: #{_lambda_.1} parent=5 // pred_region
        %s133 = ssub.s32 %s15, 1
      $region12: #{_lambda_.1} parent=5 // pred_fallthru
        _
      %p134 = scmp.lt.s32.totalorder %s15, 2
      // Predicated region
      $region13: #{_lambda_.1} parent=5 // pred_check
        %p135 = pneg %p134
      $region14: #{_lambda_.1} parent=5 // pred_check_branch
        %137 = sbr.rel (%p135) target = $region16
      $region15: #{_lambda_.1} parent=5 // pred_region
        // Predicated region
        $region17: #{_lambda_.1} parent=15 // pred_check
          %p138 = pneg %p35
        $region18: #{_lambda_.1} parent=15 // pred_check_branch
          %140 = sbr.rel (%p138) target = $region20
        $region19: #{_lambda_.1} parent=15 // pred_region
          %s141 = sand.u32 %s25, 1
          %s142 = scalar_lea.sflag [#allocation3], %s141
          %s143 = sand.u32 %s25, 1
          %s144 = smul.addr %s143, 8
          %s145 = scalar_lea.vmem [#allocation2], %s144
          %147 = vsyncadd %s142, 0
          %s148 = smul.addr %s15, 8
          %s149 = scalar_lea.hbm %s0, %s148
          %s151 = sshll.u32 %s149, 4
          %s152 = int_to_ptr.hbm [resolvable:$true] %s151
          %s153 = sshll.u32 %s145, 4
          %s154 = int_to_ptr.vmem [resolvable:$true] %s153
          %156 = dma.hbm_to_vmem [thread:$0]  %s152, 128, %s154, %s142
        $region20: #{_lambda_.1} parent=15 // pred_fallthru
          _
        // Predicated region
        $region21: #{_lambda_.1} parent=15 // pred_check
          %p157 = pneg %p61
        $region22: #{_lambda_.1} parent=15 // pred_check_branch
          %159 = sbr.rel (%p157) target = $region24
        $region23: #{_lambda_.1} parent=15 // pred_region
          %s160 = sand.u32 %s15, 1
          %s161 = scalar_lea.sflag [#allocation5], %s160
          %s162 = sand.u32 %s51, 1
          %s163 = smul.addr %s162, 8
          %s164 = scalar_lea.vmem [#allocation4], %s163
          %166 = vsyncadd %s161, 0
          %s167 = smul.addr %s15, 8
          %s168 = scalar_lea.hbm %s1, %s167
          %s170 = sshll.u32 %s168, 4
          %s171 = int_to_ptr.hbm [resolvable:$true] %s170
          %s172 = sshll.u32 %s164, 4
          %s173 = int_to_ptr.vmem [resolvable:$true] %s172
          %175 = dma.hbm_to_vmem [thread:$0]  %s171, 128, %s173, %s161
        $region24: #{_lambda_.1} parent=15 // pred_fallthru
          _
        // Predicated region
        $region25: #{_lambda_.1} parent=15 // pred_check
          %p176 = pneg %p87
        $region26: #{_lambda_.1} parent=15 // pred_check_branch
          %178 = sbr.rel (%p176) target = $region28
        $region27: #{_lambda_.1} parent=15 // pred_region
          %s179 = sand.u32 %s15, 1
          %s180 = scalar_lea.sflag [#allocation5], %s179
          %s181 = sand.u32 %s77, 1
          %s182 = smul.addr %s181, 8
          %s183 = scalar_lea.vmem [#allocation6], %s182
          %185 = vsyncadd %s180, 0
          %s186 = smul.addr %s15, 8
          %s187 = scalar_lea.hbm %s2, %s186
          %s189 = sshll.u32 %s187, 4
          %s190 = int_to_ptr.hbm [resolvable:$true] %s189
          %s191 = sshll.u32 %s183, 4
          %s192 = int_to_ptr.vmem [resolvable:$true] %s191
          %194 = dma.hbm_to_vmem [thread:$0]  %s190, 128, %s192, %s180
        $region28: #{_lambda_.1} parent=15 // pred_fallthru
          _
      $region16: #{_lambda_.1} parent=5 // pred_fallthru
        _
      %p195 = scmp.le.s32.totalorder 1, %s15
      %p196 = scmp.lt.s32.totalorder %s15, 3
      %p197 = pnand %p195, %p196
      %p198 = pneg %p197
      // Predicated region
      $region29: #{_lambda_.1} parent=5 // pred_check
        _
      $region30: #{_lambda_.1} parent=5 // pred_check_branch
        %200 = sbr.rel (%p197) target = $region32
      $region31: #{_lambda_.1} parent=5 // pred_region
        %s201 = ssub.s32 %s15, 1
        %s202 = sand.u32 %s28, 1
        %s203 = scalar_lea.sflag [#allocation3], %s202
        %s204 = sand.u32 %s28, 1
        %s205 = smul.addr %s204, 8
        %s206 = scalar_lea.vmem [#allocation2], %s205
        // Predicated region
        $region33: #{_lambda_.1} parent=31 // pred_check
          %p207 = pneg %p41
        $region34: #{_lambda_.1} parent=31 // pred_check_branch
          %209 = sbr.rel (%p207) target = $region36
        $region35: #{_lambda_.1} parent=31 // pred_region
          %211 = dma.done %s203, 128
        $region36: #{_lambda_.1} parent=31 // pred_fallthru
          _
        %s212 = sand.u32 %s20, 1
        %s213 = scalar_lea.sflag [#allocation5], %s212
        %s214 = sand.u32 %s54, 1
        %s215 = smul.addr %s214, 8
        %s216 = scalar_lea.vmem [#allocation4], %s215
        // Predicated region
        $region37: #{_lambda_.1} parent=31 // pred_check
          %p217 = pneg %p67
        $region38: #{_lambda_.1} parent=31 // pred_check_branch
          %219 = sbr.rel (%p217) target = $region40
        $region39: #{_lambda_.1} parent=31 // pred_region
          %221 = dma.done %s213, 128
        $region40: #{_lambda_.1} parent=31 // pred_fallthru
          _
        %s222 = sand.u32 %s20, 1
        %s223 = scalar_lea.sflag [#allocation5], %s222
        %s224 = sand.u32 %s80, 1
        %s225 = smul.addr %s224, 8
        %s226 = scalar_lea.vmem [#allocation6], %s225
        // Predicated region
        $region41: #{_lambda_.1} parent=31 // pred_check
          %p227 = pneg %p93
        $region42: #{_lambda_.1} parent=31 // pred_check_branch
          %229 = sbr.rel (%p227) target = $region44
        $region43: #{_lambda_.1} parent=31 // pred_region
          %231 = dma.done %s223, 128
        $region44: #{_lambda_.1} parent=31 // pred_fallthru
          _
        %s232 = sand.u32 %s28, 1
        %s233 = scalar_lea.sflag [#allocation3], %s232
        %s234 = sand.u32 %s28, 1
        %s235 = smul.addr %s234, 8
        %s236 = scalar_lea.vmem [#allocation2], %s235
        %p237 = pneg %p41
        %p238 = pneg %p38
        %s239 = sand.u32 %s20, 1
        %s240 = scalar_lea.sflag [#allocation5], %s239
        %s241 = sand.u32 %s54, 1
        %s242 = smul.addr %s241, 8
        %s243 = scalar_lea.vmem [#allocation4], %s242
        %p244 = pneg %p67
        %p245 = pneg %p64
        %s246 = sand.u32 %s20, 1
        %s247 = scalar_lea.sflag [#allocation5], %s246
        %s248 = sand.u32 %s80, 1
        %s249 = smul.addr %s248, 8
        %s250 = scalar_lea.vmem [#allocation6], %s249
        %p251 = pneg %p93
        %p252 = pneg %p90
        %p253 = pneg %p119
        %p254 = pneg %p116
        %p255 = scmp.lt.s32.totalorder %s20, 1
        %s256 = scalar_select %p255, %s20, 1
        %s257 = smul.addr %s256, 8
        %s258 = scalar_lea.vmem %s3, %s257
        %p259 = scmp.lt.s32.totalorder %s20, 1
        %s260 = scalar_select %p259, %s20, 1
        %s261 = smul.addr %s260, 8
        %s262 = scalar_lea.vmem %s3, %s261
        %v263 = vld [vmem:[%s206] sm:$0xff]
        %v264 = vld [vmem:[%s216] sm:$0xff]
        %v265 = vld [vmem:[%s226] sm:$0xff]
        %v266 = vsub.f32 %v263, %v264
        %v267 = vsub.f32 %v263, %v265
        %v268 = vmul.f32 %v266, %v266
        %v269 = vmul.f32 %v267, %v267
        %v270 = vsub.f32 %v268, %v269
        %271 = vadd.xlane.f32.xlu0 %v270
        %v272 = vpop.xlane.xlu0 %271
        %v273 = vadd.f32 %v272, 1.0
        %v274 = vmax.f32 %v273, 0.0
        %s275 = smul.u32 %s20, 8
        %v276 = vlaneseq
        %v277 = vshrl.u32 %v276, 7
        %v278 = vstv %s275
        %v279 = vadd.s32 %v278, %v277
        %vm280 = vcmp.lt.s32.totalorder %v279, 13
        %v281 = vsel %vm280, %v274, 0.0
        %vm282 = vcmask 7168
        %283 = vst.msk [vmem:[%s262] sm:$0xff] %vm282, %v281
        %p284 = scmp.lt.s32.totalorder %s20, 1
        %s285 = scalar_select %p284, %s20, 1
        %s286 = smul.addr %s285, 8
        %s287 = scalar_lea.vmem %s3, %s286
        // Predicated region
        $region45: #{_lambda_.1} parent=31 // pred_check
          %p288 = pneg %p116
        $region46: #{_lambda_.1} parent=31 // pred_check_branch
          %290 = sbr.rel (%p288) target = $region48
        $region47: #{_lambda_.1} parent=31 // pred_region
          _
        $region48: #{_lambda_.1} parent=31 // pred_fallthru
          _
      $region32: #{_lambda_.1} parent=5 // pred_fallthru
        _
      %p291 = scmp.le.s32.totalorder 2, %s15
      // Predicated region
      $region49: #{_lambda_.1} parent=5 // pred_check
        %p292 = pneg %p291
      $region50: #{_lambda_.1} parent=5 // pred_check_branch
        %294 = sbr.rel (%p292) target = $region52
      $region51: #{_lambda_.1} parent=5 // pred_region
        %s295 = ssub.s32 %s15, 2
        // Predicated region
        $region53: #{_lambda_.1} parent=51 // pred_check
          %p296 = pneg %p122
        $region54: #{_lambda_.1} parent=51 // pred_check_branch
          %298 = sbr.rel (%p296) target = $region56
        $region55: #{_lambda_.1} parent=51 // pred_region
          %p299 = scmp.lt.s32.totalorder %s21, 1
          %s300 = scalar_select %p299, %s21, 1
          %s301 = smul.addr %s300, 8
          %s302 = scalar_lea.vmem %s3, %s301
        $region56: #{_lambda_.1} parent=51 // pred_fallthru
          _
      $region52: #{_lambda_.1} parent=5 // pred_fallthru
        _
    $region6: #{_lambda_.1} parent=1 // loop_footer
      %s19 = sadd.s32 1, %s15
    $region7: #{_lambda_.1} parent=1 // loop_footer_branch
      %14 = sbr.rel target = $region3
    $region8: #{_lambda_.1} parent=1 // loop_exit
      _
    %303 = vsyncpa [#allocation3], 1
    %s304 = scalar_lea.sflag [#allocation3], 1
    %305 = vsyncpa %s304, 1
    %306 = vsyncpa [#allocation5], 1
    %s307 = scalar_lea.sflag [#allocation5], 1
    %308 = vsyncpa %s307, 1

</llo_original>
